<compile_context>
chip_gen: v7x
topology: tpu7x:2x2x1
jax: 0.10.0
libtpu: 0.0.40
codegen_flags: <defaults>
</compile_context>

<pallas_src>
import functools

import jax
import jax.numpy as jnp
from jax.experimental import pallas as pl
from jax.experimental.pallas import tpu as pltpu


def _round_up(x, m):
    return ((x + m - 1) // m) * m


def _pick_tile(total, target, multiple):
    """Largest divisor of `total` that is a multiple of `multiple` and <= target."""
    best = multiple
    t = multiple
    while t <= min(total, target):
        if total % t == 0:
            best = t
        t += multiple
    return best


def _choose_m_tile(m, target=512):
    """Pick (TM, M_pad).

    Prefer a TM that divides M exactly so neither the input pad nor the output
    slice costs a full-size HBM copy; fall back to padding only when M has no
    usable divisor.
    """
    if m % 8 == 0:
        tm = _pick_tile(m, target, 8)
        if tm >= min(m, 128):
            return tm, m
    tm = min(target, _round_up(m, 8))
    return tm, _round_up(m, tm)


def _vmem_limit_bytes(working_set_bytes):
    """Generation-aware scoped-VMEM limit.

    Enough for the double-buffered tiles plus Mosaic scratch headroom, at least
    the common 32 MiB default (v5e's default is only 16 MiB), and capped well
    under physical capacity (64 MiB on v7x, 128 MiB on v5e/v6e).
    """
    cap = 64 * 1024 * 1024
    try:
        info = pltpu.get_tpu_info()
        cap = int(getattr(info, "vmem_capacity_bytes", cap))
    except Exception:
        pass
    want = working_set_bytes + (8 << 20)
    want = max(want, 32 << 20)
    return int(min(want, int(cap * 0.75)))


def _patch_embed_kernel(patches_ref, w_ref, b_ref, out_ref):
    # patches_ref: (TM, K)      w_ref: (K, TE)  (pre-transposed, E on lanes)
    # b_ref:       (1, TE) f32  out_ref: (TM, TE)
    acc = jnp.dot(patches_ref[...], w_ref[...],
                  preferred_element_type=jnp.float32)
    out_ref[...] = (acc + b_ref[...]).astype(out_ref.dtype)


def extract_patches(x, patch_size):
    """(B, C, H, W) -> (B, N, C*p*p), channel-major per-patch features.

    Matches PyTorch's unfold(2,p,p).unfold(3,p,p).permute(0,2,3,1,4,5).view().
    """
    B, C, H, W = x.shape
    p = patch_size
    hp, wp = H // p, W // p
    x = x.reshape(B, C, hp, p, wp, p)
    x = jnp.transpose(x, (0, 2, 4, 1, 3, 5))
    return x.reshape(B, hp * wp, C * p * p)


@functools.partial(jax.jit, static_argnames=("patch_size", "use_bf16"))
def patch_embedding(x, weight, bias, *, patch_size, use_bf16=True):
    """Pallas-backed equivalent of PatchEmbedding.forward.

    x:      (B, C, H, W)
    weight: (n_embd, C*p*p)  -- PyTorch nn.Linear layout
    bias:   (n_embd,)
    returns (B, N, n_embd)  (dtype follows x, matching nn.Linear semantics)
    """
    B, C, H, W = x.shape
    p = patch_size
    N = (H // p) * (W // p)
    K = C * p * p
    E = weight.shape[0]
    M = B * N
    out_dtype = x.dtype

    # bf16 matmul inputs (f32 accumulation).  Cast before extraction so the
    # XLA-side patch transpose only moves bf16 bytes through HBM.
    in_dtype = jnp.bfloat16 if use_bf16 else x.dtype
    patches = extract_patches(x.astype(in_dtype), p).reshape(M, K)

    # ---- tiling -------------------------------------------------------------
    TM, M_pad = _choose_m_tile(M, target=512)
    E_pad = _round_up(E, 128)                       # lane-dense output stores
    TE = E_pad if E_pad <= 1024 else _pick_tile(E_pad, 1024, 128)
    n_e = E_pad // TE
    n_m = M_pad // TM

    if M_pad != M:
        patches = jnp.pad(patches, ((0, M_pad - M), (0, 0)))

    # One-time weight transpose (tiny, reused across all M tiles): canonical
    # (K, E) MXU feed with E on lanes.
    w = weight.astype(in_dtype)
    b = bias.astype(jnp.float32)
    if E_pad != E:
        w = jnp.pad(w, ((0, E_pad - E), (0, 0)))
        b = jnp.pad(b, ((0, E_pad - E),))
    w_t = w.T                                       # (K, E_pad)
    b = b.reshape(1, E_pad)

    in_isz = jnp.dtype(in_dtype).itemsize
    out_isz = jnp.dtype(out_dtype).itemsize
    cost = pl.CostEstimate(
        flops=2 * M_pad * K * E_pad,
        transcendentals=0,
        # E-outer grid: patches stream once per E tile; weight/bias read once.
        bytes_accessed=n_e * M_pad * K * in_isz
        + K * E_pad * in_isz + 4 * E_pad
        + M_pad * E_pad * out_isz,
    )

    # Double-buffered VMEM working set (inputs + output tiles).
    working_set = 2 * (TM * K * in_isz + K * TE * in_isz + TE * 4
                       + TM * TE * out_isz)

    # Grid: E-outer so the (K, TE) weight tile stays VMEM-resident across the
    # entire M sweep even when E_pad > TE.  M is the inner "parallel" axis
    # (length >= 2 at real sizes) that v7x's two TensorCores split.
    out = pl.pallas_call(
        _patch_embed_kernel,
        out_shape=jax.ShapeDtypeStruct((M_pad, E_pad), out_dtype),
        grid_spec=pltpu.PrefetchScalarGridSpec(
            num_scalar_prefetch=0,
            grid=(n_e, n_m),
            in_specs=[
                pl.BlockSpec((TM, K), lambda e, i: (i, 0)),   # patches stream
                pl.BlockSpec((K, TE), lambda e, i: (0, e)),   # weight: resident per E tile
                pl.BlockSpec((1, TE), lambda e, i: (0, e)),   # bias: resident per E tile
            ],
            out_specs=pl.BlockSpec((TM, TE), lambda e, i: (i, e)),
        ),
        compiler_params=pltpu.CompilerParams(
            dimension_semantics=("parallel", "parallel"),
            vmem_limit_bytes=_vmem_limit_bytes(working_set)),
        cost_estimate=cost,
    )(patches, w_t, b)

    return out[:M, :E].reshape(B, N, E)


if __name__ == "__main__":
    # Config: in_channels=4, patch_size=4, n_embd=32, image 16x16, batch 2.
    B, C, H, W = 2, 4, 16, 16
    p = 4
    n_embd = 32
    K = C * p * p            # 64
    N = (H // p) * (W // p)  # 16

    key = jax.random.PRNGKey(0)
    kx, kw, kb = jax.random.split(key, 3)

    x = jax.random.normal(kx, (B, C, H, W), dtype=jnp.float32)
    bound = 1.0 / jnp.sqrt(K)
    weight = jax.random.uniform(kw, (n_embd, K), jnp.float32, -bound, bound)
    bias = jax.random.uniform(kb, (n_embd,), jnp.float32, -bound, bound)

    # Pure-JAX reference of the same math.
    ref = extract_patches(x, p) @ weight.T + bias

    # Exact f32 path.
    out_f32 = jax.block_until_ready(
        patch_embedding(x, weight, bias, patch_size=p, use_bf16=False))
    assert out_f32.shape == (B, N, n_embd), out_f32.shape
    assert jnp.allclose(out_f32, ref, atol=1e-5, rtol=1e-5)

    # Default fast path: bf16 matmul inputs, f32 accumulation.
    out_bf16 = jax.block_until_ready(
        patch_embedding(x, weight, bias, patch_size=p))
    assert out_bf16.shape == (B, N, n_embd), out_bf16.shape
    assert jnp.allclose(out_bf16, ref, atol=5e-2, rtol=5e-2)

    print("KERNEL_OK")
</pallas_src>

<mosaic_0001>
module attributes {stable_mosaic.version = 11 : i64} {
  func.func @_patch_embed_kernel(%arg0: i32, %arg1: i32, %arg2: memref<32x64xf32, #tpu.memory_space<vmem>>, %arg3: memref<64x128xf32, #tpu.memory_space<vmem>>, %arg4: memref<1x128xf32, #tpu.memory_space<vmem>>, %arg5: memref<32x128xf32, #tpu.memory_space<vmem>>) attributes {dimension_semantics = [#tpu.dimension_semantics<parallel>, #tpu.dimension_semantics<parallel>], iteration_bounds = array<i64: 1, 1>, scalar_prefetch = 0 : i64, scratch_operands = 0 : i64, tpu.core_type = #tpu.core_type<tc>, window_params = [{transform_indices = @transform_0, window_bounds = array<i64: 32, 64>}, {transform_indices = @transform_1, window_bounds = array<i64: 64, 128>}, {transform_indices = @transform_2, window_bounds = array<i64: 1, 128>}, {transform_indices = @transform_3, window_bounds = array<i64: 32, 128>}]} {
    %c0 = arith.constant 0 : index
    %c0_0 = arith.constant 0 : index
    %0 = vector.load %arg2[%c0, %c0_0] : memref<32x64xf32, #tpu.memory_space<vmem>>, vector<32x64xf32>
    %c0_1 = arith.constant 0 : index
    %c0_2 = arith.constant 0 : index
    %1 = vector.load %arg3[%c0_1, %c0_2] : memref<64x128xf32, #tpu.memory_space<vmem>>, vector<64x128xf32>
    %cst = arith.constant dense<0.000000e+00> : vector<32x128xf32>
    %2 = tpu.matmul %0, %1, %cst {dimension_numbers = #tpu.dot_dimension_numbers<[1], [0], [0], [1], [0, 0, 1, 1], [], []>} : vector<32x64xf32>, vector<64x128xf32>, vector<32x128xf32> -> vector<32x128xf32>
    %c0_3 = arith.constant 0 : index
    %c0_4 = arith.constant 0 : index
    %3 = vector.load %arg4[%c0_3, %c0_4] : memref<1x128xf32, #tpu.memory_space<vmem>>, vector<1x128xf32>
    %4 = vector.broadcast %3 : vector<1x128xf32> to vector<32x128xf32>
    %5 = arith.addf %2, %4 : vector<32x128xf32>
    %c0_5 = arith.constant 0 : index
    %c0_6 = arith.constant 0 : index
    %6 = vector.load %arg5[%c0_5, %c0_6] : memref<32x128xf32, #tpu.memory_space<vmem>>, vector<32x128xf32>
    tpu.vector_store %arg5[%c0_5, %c0_6], %5 {strides = array<i32>} : memref<32x128xf32, #tpu.memory_space<vmem>>, vector<32x128xf32>,
    return
  }
  func.func @transform_0(%arg0: i32, %arg1: i32) -> (i32, i32) {
    %c0_i32 = arith.constant 0 : i32
    %c0_i32_0 = arith.constant 0 : i32
    return %arg1, %c0_i32 : i32, i32
  }
  func.func @transform_1(%arg0: i32, %arg1: i32) -> (i32, i32) {
    %c0_i32 = arith.constant 0 : i32
    %c0_i32_0 = arith.constant 0 : i32
    return %c0_i32, %arg0 : i32, i32
  }
  func.func @transform_2(%arg0: i32, %arg1: i32) -> (i32, i32) {
    %c0_i32 = arith.constant 0 : i32
    %c0_i32_0 = arith.constant 0 : i32
    return %c0_i32, %arg0 : i32, i32
  }
  func.func @transform_3(%arg0: i32, %arg1: i32) -> (i32, i32) {
    %c0_i32 = arith.constant 0 : i32
    return %arg1, %arg0 : i32, i32
  }
}

</mosaic_0001>

<llo_original>
// kernel: patch_embedding.1
$region0: #{patch_embedding.1}
  #allocation0 [shape = 'u32[]', space=smem, size = 0x4, offset = 0x4, fixed_abs, tag = 'smem constant byte address 0x4 - core index']
  #allocation1 [shape = 'u32[144,128]{1,0:T(1,128)}', space=vmem, size = 0x12000, scoped, tag = 'internal scratch']
  %s0 = inlined_call_operand.vmem [shape: f32[32,64], index: 0, kind: input, shape index: {}]
  %s1 = inlined_call_operand.vmem [shape: f32[64,128], index: 1, kind: input, shape index: {}]
  %s2 = inlined_call_operand.vmem [shape: f32[1,128], index: 2, kind: input, shape index: {}]
  %s3 = inlined_call_operand.hbm [shape: f32[32,128], index: 3, kind: output, shape index: {}]
  %s4 = sld [smem:[#allocation0]]
  $region22: #{patch_embedding.1} parent=0
    _
  %s6 = ssub.s32 1, %s4
  %s7 = scalar_select 0, %s6, %s4
  $region1: #{patch_embedding.1} parent=0
    #allocation2 [shape = 'u8[16384]{0}', space=vmem, size = 0x4000, scoped, tag = 'output window, operand 0, single buffered']
    #allocation3 [shape = 's32[1]{0}', space=sflag, size = 0x4, scoped, tag = 'scoped memory for patch_embedding.1']
    %8 = vsyncpa [#allocation3], 0
    // Predicated region
    $region2: #{patch_embedding.1} parent=1 // pred_check
      _
    $region3: #{patch_embedding.1} parent=1 // pred_check_branch
      %10 = sbr.rel (0) target = $region5
    $region4: #{patch_embedding.1} parent=1 // pred_region
      _
    $region5: #{patch_embedding.1} parent=1 // pred_fallthru
      _
    // Predicated region
    $region6: #{patch_embedding.1} parent=1 // pred_check
      _
    $region7: #{patch_embedding.1} parent=1 // pred_check_branch
      %12 = sbr.rel (0) target = $region9
    $region8: #{patch_embedding.1} parent=1 // pred_region
      _
    $region9: #{patch_embedding.1} parent=1 // pred_fallthru
      _
    // Predicated region
    $region10: #{patch_embedding.1} parent=1 // pred_check
      _
    $region11: #{patch_embedding.1} parent=1 // pred_check_branch
      %14 = sbr.rel (0) target = $region13
    $region12: #{patch_embedding.1} parent=1 // pred_region
      _
    $region13: #{patch_embedding.1} parent=1 // pred_fallthru
      _
    %v15 = vld [vmem:[%s0] sm:$0xff]
    %v16 = vld [vmem:[%s0 + $0x8] sm:$0xff]
    %v17 = vld [vmem:[%s0 + $0x10] sm:$0xff]
    %v18 = vld [vmem:[%s0 + $0x18] sm:$0xff]
    %v19 = vld [vmem:[%s1] sm:$0xff]
    %v20 = vld [vmem:[%s1 + $0x8] sm:$0xff]
    %v21 = vld [vmem:[%s1 + $0x10] sm:$0xff]
    %v22 = vld [vmem:[%s1 + $0x18] sm:$0xff]
    %v23 = vld [vmem:[%s1 + $0x20] sm:$0xff]
    %v24 = vld [vmem:[%s1 + $0x28] sm:$0xff]
    %v25 = vld [vmem:[%s1 + $0x30] sm:$0xff]
    %v26 = vld [vmem:[%s1 + $0x38] sm:$0xff]
    %v27 = vld [vmem:[%s2] sm:$0x1]
    %v29 = vlaneseq
    %v30 = vshrl.u32 %v29, 7
    %v31 = vsub.s32 0, %v30
    %v32 = vrot.slane %v27, %v31
    %vm34 = vcmask 523264
    %v36 = vsel %vm34, %v15, 0
    %v39 = vsel %vm34, %v16, 0
    %v42 = vsel %vm34, %v17, 0
    %v45 = vsel %vm34, %v18, 0
    %47 = vmatprep.subr.mxu0 0.0
    %48 = vmatpush1.msra.mxu0 %v19
    %49 = vmatprep.subr.mxu0 0.0
    %50 = vmatpush1.msra.mxu0 %v20
    %51 = vmatprep.subr.mxu0 0.0
    %52 = vmatpush1.msra.mxu0 %v21
    %53 = vmatprep.subr.mxu0 0.0
    %54 = vmatpush1.msra.mxu0 %v22
    %55 = vmatprep.subr.mxu0 0.0
    %56 = vmatpush1.msra.mxu0 %v23
    %57 = vmatprep.subr.mxu0 0.0
    %58 = vmatpush1.msra.mxu0 %v24
    %59 = vmatprep.subr.mxu0 0.0
    %60 = vmatpush1.msra.mxu0 %v25
    %61 = vmatprep.subr.mxu0 0.0
    %62 = vmatpush1.msra.mxu0 %v26
    %63 = vmatprep.subr.mxu0 0.0
    %64 = vmatpush1.msra.mxu0 0.0
    %65 = vmatprep.subr.mxu0 0.0
    %66 = vmatpush1.msra.mxu0 0.0
    %67 = vmatprep.subr.mxu0 0.0
    %68 = vmatpush1.msra.mxu0 0.0
    %69 = vmatprep.subr.mxu0 0.0
    %70 = vmatpush1.msra.mxu0 0.0
    %71 = vmatprep.subr.mxu0 0.0
    %72 = vmatpush1.msra.mxu0 0.0
    %73 = vmatprep.subr.mxu0 0.0
    %74 = vmatpush1.msra.mxu0 0.0
    %75 = vmatprep.subr.mxu0 0.0
    %76 = vmatpush1.msra.mxu0 0.0
    %77 = vmatprep.subr.mxu0 0.0
    %78 = vmatpush1.msra.mxu0 0.0
    %79 = vmatprep.subr.mxu0 0.0
    %80 = vmatpush1.msra.mxu0 0.0
    %81 = vmatprep.subr.mxu0 0.0
    %82 = vmatpush1.msra.mxu0 0.0
    %83 = vmatprep.subr.mxu0 0.0
    %84 = vmatpush1.msra.mxu0 0.0
    %85 = vmatprep.subr.mxu0 0.0
    %86 = vmatpush1.msra.mxu0 0.0
    %87 = vmatprep.subr.mxu0 0.0
    %88 = vmatpush1.msra.mxu0 0.0
    %89 = vmatprep.subr.mxu0 0.0
    %90 = vmatpush1.msra.mxu0 0.0
    %91 = vmatprep.subr.mxu0 0.0
    %92 = vmatpush1.msra.mxu0 0.0
    %93 = vmatprep.subr.mxu0 0.0
    %94 = vmatpush1.msra.mxu0 0.0
    %95 = vmatprep.subr.mxu0 0.0
    %96 = vmatpush1.msra.mxu0 0.0
    %97 = vmatprep.subr.mxu0 0.0
    %98 = vmatpush1.msra.mxu0 0.0
    %99 = vmatprep.subr.mxu0 0.0
    %100 = vmatpush1.msra.mxu0 0.0
    %101 = vmatprep.subr.mxu0 0.0
    %102 = vmatpush1.msra.mxu0 0.0
    %103 = vmatprep.subr.mxu0 0.0
    %104 = vmatpush1.msra.mxu0 0.0
    %105 = vmatprep.subr.mxu0 0.0
    %106 = vmatpush1.msra.mxu0 0.0
    %107 = vmatprep.subr.mxu0 0.0
    %108 = vmatpush1.msra.mxu0 0.0
    %109 = vmatprep.subr.mxu0 0.0
    %110 = vmatpush1.msra.mxu0 0.0
    %111 = vmatprep.mubr.f32.mxu0 0.0
    %112 = vmatmul.mubr.f32.gmra.mrb[0].mxu0 %v36
    %v113 = vpop.f32.mrb[0].mxu0
    %v114 = vadd.f32 %v32, %v113
    %v115 = vpop.f32.mrb[0].mxu0
    %116 = vmatprep.mubr.f32.mxu0 0.0
    %117 = vmatmul.mubr.f32.gmra.mrb[0].mxu0 %v39
    %v118 = vpop.f32.mrb[0].mxu0
    %v119 = vadd.f32 %v32, %v118
    %v120 = vpop.f32.mrb[0].mxu0
    %121 = vmatprep.mubr.f32.mxu0 0.0
    %122 = vmatmul.mubr.f32.gmra.mrb[0].mxu0 %v42
    %v123 = vpop.f32.mrb[0].mxu0
    %v124 = vadd.f32 %v32, %v123
    %v125 = vpop.f32.mrb[0].mxu0
    %126 = vmatprep.mubr.f32.mxu0 0.0
    %127 = vmatmul.mubr.f32.gmra.mrb[0].mxu0 %v45
    %v128 = vpop.f32.mrb[0].mxu0
    %v129 = vadd.f32 %v32, %v128
    %v130 = vpop.f32.mrb[0].mxu0
    %131 = vdwg.mxu0
    %132 = vst [vmem:[#allocation2] sm:$0xff] %v114
    %133 = vst [vmem:[#allocation2 + $0x8] sm:$0xff] %v119
    %134 = vst [vmem:[#allocation2 + $0x10] sm:$0xff] %v124
    %135 = vst [vmem:[#allocation2 + $0x18] sm:$0xff] %v129
    // Predicated region
    $region14: #{patch_embedding.1} parent=1 // pred_check
      _
    $region15: #{patch_embedding.1} parent=1 // pred_check_branch
      %137 = sbr.rel (0) target = $region17
    $region16: #{patch_embedding.1} parent=1 // pred_region
      %s139 = ssub.s32 512, 512
      %140 = vsyncadd [#allocation3], %s139
      %s141 = sshll.u32 [#allocation2], 4
      %s142 = int_to_ptr.vmem [resolvable:$true] %s141
      %147 = dma.vmem_to_hbm [thread:$0]  %s142, 512, %s3, [#allocation3], 128, 128, 8
    $region17: #{patch_embedding.1} parent=1 // pred_fallthru
      _
    // Predicated region
    $region18: #{patch_embedding.1} parent=1 // pred_check
      _
    $region19: #{patch_embedding.1} parent=1 // pred_check_branch
      %149 = sbr.rel (0) target = $region21
    $region20: #{patch_embedding.1} parent=1 // pred_region
      %150 = dma.done [#allocation3], 512
    $region21: #{patch_embedding.1} parent=1 // pred_fallthru
      _
    %151 = vsyncpa [#allocation3], 1

</llo_original>
